<compile_context>
chip_gen: v6e
topology: v6e:2x2x1
jax: 0.10.0
libtpu: 0.0.40
codegen_flags: <defaults>
</compile_context>

<pallas_src>
from functools import partial

import jax
import jax.numpy as jnp
from jax.experimental import pallas as pl
from jax.experimental.pallas import tpu as pltpu

LANES = 128                  # lane-dense slab width (full vreg lane row)
DEFAULT_BLOCK_ROWS = 8192    # 8192 x 128 x 4 B = 4 MiB per tile
VMEM_LIMIT_BYTES = 32 << 20  # 2 x (x + o) double-buffered tiles = 16 MiB << 32 MiB
SMALL_N_FALLBACK = 1 << 14   # below this many elements, plain XLA wins


def _round_down(a, m):
    return (a // m) * m


def linear_kernel(w_ref, b_ref, x_ref, o_ref):
    # w_ref, b_ref: (1, 1) f32 in SMEM; x_ref, o_ref: (br, 128) f32 in VMEM.
    # One VPU multiply-add per vreg; deep in the slack behind the HBM DMA.
    o_ref[...] = x_ref[...] * w_ref[0, 0] + b_ref[0, 0]


def _pallas_slab_forward(x2d, w2d, b2d, block_rows):
    """x2d: (n_rows, 128) f32 -> (n_rows, 128) f32 via y = x*w + b."""
    n_rows = x2d.shape[0]
    block_rows = max(8, _round_down(block_rows, 8))

    if n_rows < 8:
        br = n_rows                                  # block == full row extent
    else:
        br = min(block_rows, _round_down(n_rows, 8))  # sublane-aligned, <= n_rows

    grid = (pl.cdiv(n_rows, br),)  # last block may be partial -> masked edge

    return pl.pallas_call(
        linear_kernel,
        out_shape=jax.ShapeDtypeStruct((n_rows, LANES), jnp.float32),
        grid=grid,
        in_specs=[
            pl.BlockSpec(memory_space=pltpu.MemorySpace.SMEM),  # weight scalar
            pl.BlockSpec(memory_space=pltpu.MemorySpace.SMEM),  # bias scalar
            pl.BlockSpec((br, LANES), lambda i: (i, 0)),        # x tile
        ],
        out_specs=pl.BlockSpec((br, LANES), lambda i: (i, 0)),
        compiler_params=pltpu.CompilerParams(
            # Row tiles are independent; shardable across TCs where supported.
            dimension_semantics=("parallel",),
            vmem_limit_bytes=VMEM_LIMIT_BYTES,
        ),
        cost_estimate=pl.CostEstimate(
            flops=2 * n_rows * LANES,
            transcendentals=0,
            bytes_accessed=2 * n_rows * LANES * 4,
        ),
    )(w2d, b2d, x2d)


@partial(jax.jit, static_argnames=("block_rows", "force_pallas"))
def linear_regression_forward(x, weight, bias, *,
                              block_rows=DEFAULT_BLOCK_ROWS,
                              force_pallas=False):
    """x: (N, 1); weight: (1, 1); bias: (1,) -> (N, 1), y = x @ W^T + b."""
    n = x.shape[0]
    orig_dtype = x.dtype
    w2d = weight.reshape(1, 1).astype(jnp.float32)
    b2d = bias.reshape(1, 1).astype(jnp.float32)

    # Tiny batches: a Pallas launch is pure fixed overhead — let XLA fuse it.
    if n < SMALL_N_FALLBACK and not force_pallas:
        return (x.astype(jnp.float32) @ w2d.T + b2d[0]).astype(orig_dtype)

    x_flat = x.reshape(-1).astype(jnp.float32)

    if n % LANES == 0:
        # Zero-copy fast path: metadata-only reshape to a lane-dense slab,
        # masked cdiv edge block if n_rows % br != 0.  Ideal 1-read/1-write.
        n_rows = n // LANES
        out2d = _pallas_slab_forward(x_flat.reshape(n_rows, LANES),
                                     w2d, b2d, block_rows)
        return out2d.reshape(n, 1).astype(orig_dtype)

    # Ragged N fallback: pad only to the next multiple of 128 (<=127 elems),
    # then slice the output.  This costs one extra HBM pass over x and out;
    # it is only taken when N is not lane-aligned.
    n_rows = pl.cdiv(n, LANES)
    padded_len = n_rows * LANES
    x_flat = jnp.pad(x_flat, (0, padded_len - n))
    out2d = _pallas_slab_forward(x_flat.reshape(n_rows, LANES),
                                 w2d, b2d, block_rows)
    return out2d.reshape(-1)[:n].reshape(n, 1).astype(orig_dtype)


if __name__ == "__main__":
    key = jax.random.PRNGKey(0)
    kx, kw, kb = jax.random.split(key, 3)

    # Deterministic synthetic parameters (same shapes as the PyTorch module).
    weight = jax.random.normal(kw, (1, 1), dtype=jnp.float32)  # nn.Linear.weight
    bias = jax.random.normal(kb, (1,), dtype=jnp.float32)      # nn.Linear.bias

    # Small batches consistent with nn.Linear(1, 1); force the Pallas path so
    # the kernel is exercised.  Covers: tiny N (8), ragged N (300, pad
    # fallback), lane-aligned N with a partial row-tile (2176 -> 17 rows,
    # 16-row blocks -> masked edge block).
    for n in (8, 300, 2176):
        x = jax.random.normal(kx, (n, 1), dtype=jnp.float32)
        out = jax.block_until_ready(
            linear_regression_forward(x, weight, bias, force_pallas=True))
        ref = x @ weight.T + bias
        assert out.shape == (n, 1)
        assert jnp.allclose(out, ref, atol=1e-6, rtol=1e-6), f"mismatch at N={n}"

    print("KERNEL_OK")
</pallas_src>

<mosaic_0001>
module attributes {stable_mosaic.version = 11 : i64} {
  func.func @linear_kernel(%arg0: i32, %arg1: memref<1x1xf32, #tpu.memory_space<smem>>, %arg2: memref<1x1xf32, #tpu.memory_space<smem>>, %arg3: memref<1x128xf32, #tpu.memory_space<vmem>>, %arg4: memref<1x128xf32, #tpu.memory_space<vmem>>) attributes {dimension_semantics = [#tpu.dimension_semantics<parallel>], iteration_bounds = array<i64: 1>, scalar_prefetch = 0 : i64, scratch_operands = 0 : i64, tpu.core_type = #tpu.core_type<tc>, window_params = [{transform_indices = @transform_0, window_bounds = array<i64: 1, 1>}, {transform_indices = @transform_1, window_bounds = array<i64: 1, 1>}, {transform_indices = @transform_2, window_bounds = array<i64: 1, 128>}, {transform_indices = @transform_3, window_bounds = array<i64: 1, 128>}]} {
    %c0 = arith.constant 0 : index
    %c0_0 = arith.constant 0 : index
    %0 = vector.load %arg3[%c0, %c0_0] : memref<1x128xf32, #tpu.memory_space<vmem>>, vector<1x128xf32>
    %c0_1 = arith.constant 0 : index
    %c0_2 = arith.constant 0 : index
    %1 = memref.load %arg1[%c0_1, %c0_2] : memref<1x1xf32, #tpu.memory_space<smem>>
    %2 = vector.broadcast %1 : f32 to vector<1x128xf32>
    %3 = arith.mulf %0, %2 : vector<1x128xf32>
    %c0_3 = arith.constant 0 : index
    %c0_4 = arith.constant 0 : index
    %4 = memref.load %arg2[%c0_3, %c0_4] : memref<1x1xf32, #tpu.memory_space<smem>>
    %5 = vector.broadcast %4 : f32 to vector<1x128xf32>
    %6 = arith.addf %3, %5 : vector<1x128xf32>
    %c0_5 = arith.constant 0 : index
    %c0_6 = arith.constant 0 : index
    %7 = vector.load %arg4[%c0_5, %c0_6] : memref<1x128xf32, #tpu.memory_space<vmem>>, vector<1x128xf32>
    tpu.vector_store %arg4[%c0_5, %c0_6], %6 {strides = array<i32>} : memref<1x128xf32, #tpu.memory_space<vmem>>, vector<1x128xf32>,
    return
  }
  func.func @transform_0(%arg0: i32) -> (i32, i32) {
    %c0_i32 = arith.constant 0 : i32
    %c0_i32_0 = arith.constant 0 : i32
    %c0_i32_1 = arith.constant 0 : i32
    return %c0_i32, %c0_i32_0 : i32, i32
  }
  func.func @transform_1(%arg0: i32) -> (i32, i32) {
    %c0_i32 = arith.constant 0 : i32
    %c0_i32_0 = arith.constant 0 : i32
    %c0_i32_1 = arith.constant 0 : i32
    return %c0_i32, %c0_i32_0 : i32, i32
  }
  func.func @transform_2(%arg0: i32) -> (i32, i32) {
    %c0_i32 = arith.constant 0 : i32
    %c0_i32_0 = arith.constant 0 : i32
    return %arg0, %c0_i32 : i32, i32
  }
  func.func @transform_3(%arg0: i32) -> (i32, i32) {
    %c0_i32 = arith.constant 0 : i32
    %c0_i32_0 = arith.constant 0 : i32
    return %arg0, %c0_i32 : i32, i32
  }
}

</mosaic_0001>

<llo_original>
// kernel: linear_regression_forward.1
$region0: #{linear_regression_forward.1}
  #allocation0 [shape = 'u32[]', space=smem, size = 0x4, offset = 0x4, fixed_abs, tag = 'smem constant byte address 0x4 - core index']
  #allocation1 [shape = 'u32[144,128]{1,0:T(1,128)}', space=vmem, size = 0x12000, scoped, tag = 'internal scratch']
  #allocation2 [shape = 'f32[1,1]{1,0:T(1,128)S(6)}', space=smem, size = 0x200, scoped, tag = 'scoped memory for linear_regression_forward.1']
  #allocation3 [shape = 'f32[1,1]{1,0:T(1,128)S(6)}', space=smem, size = 0x200, scoped, tag = 'scoped memory for linear_regression_forward.1']
  %s0 = inlined_call_operand.<no memory space> [shape: f32[1,1], index: 0, kind: input, shape index: {}]
  %s1 = inlined_call_operand.<no memory space> [shape: f32[1,1], index: 1, kind: input, shape index: {}]
  %s2 = inlined_call_operand.vmem [shape: f32[1,128], index: 2, kind: input, shape index: {}]
  %s3 = inlined_call_operand.vmem [shape: f32[1,128], index: 3, kind: output, shape index: {}]
  %s4 = sld [smem:[#allocation0]]
  $region22: #{linear_regression_forward.1} parent=0
    _
  %s6 = ssub.s32 1, %s4
  %s7 = scalar_select 0, %s6, %s4
  %8 = sst [smem:[#allocation2]] %s0
  %9 = sst [smem:[#allocation3]] %s1
  // Predicated region
  $region2: #{linear_regression_forward.1} parent=0 // pred_check
    _
  $region3: #{linear_regression_forward.1} parent=0 // pred_check_branch
    %11 = sbr.rel (0) target = $region5
  $region4: #{linear_regression_forward.1} parent=0 // pred_region
    _
  $region5: #{linear_regression_forward.1} parent=0 // pred_fallthru
    _
  // Predicated region
  $region6: #{linear_regression_forward.1} parent=0 // pred_check
    _
  $region7: #{linear_regression_forward.1} parent=0 // pred_check_branch
    %13 = sbr.rel (0) target = $region9
  $region8: #{linear_regression_forward.1} parent=0 // pred_region
    _
  $region9: #{linear_regression_forward.1} parent=0 // pred_fallthru
    _
  // Predicated region
  $region10: #{linear_regression_forward.1} parent=0 // pred_check
    _
  $region11: #{linear_regression_forward.1} parent=0 // pred_check_branch
    %15 = sbr.rel (0) target = $region13
  $region12: #{linear_regression_forward.1} parent=0 // pred_region
    _
  $region13: #{linear_regression_forward.1} parent=0 // pred_fallthru
    _
  %v16 = vld [vmem:[%s2] sm:$0x1]
  %s17 = sld [smem:[#allocation2]]
  %v18 = vstv %s17
  %v19 = vmul.f32 %v16, %v18
  %s20 = sld [smem:[#allocation3]]
  %v21 = vstv %s20
  %v22 = vadd.f32 %v19, %v21
  %23 = vst [vmem:[%s3] sm:$0x1] %v22
  // Predicated region
  $region14: #{linear_regression_forward.1} parent=0 // pred_check
    _
  $region15: #{linear_regression_forward.1} parent=0 // pred_check_branch
    %25 = sbr.rel (0) target = $region17
  $region16: #{linear_regression_forward.1} parent=0 // pred_region
    _
  $region17: #{linear_regression_forward.1} parent=0 // pred_fallthru
    _
  // Predicated region
  $region18: #{linear_regression_forward.1} parent=0 // pred_check
    _
  $region19: #{linear_regression_forward.1} parent=0 // pred_check_branch
    %27 = sbr.rel (0) target = $region21
  $region20: #{linear_regression_forward.1} parent=0 // pred_region
    _
  $region21: #{linear_regression_forward.1} parent=0 // pred_fallthru
    _

</llo_original>
